<compile_context>
chip_gen: v7x
topology: tpu7x:2x2x1
jax: 0.10.0
libtpu: 0.0.40
codegen_flags: <defaults>
</compile_context>

<pallas_src>
import functools

import jax
import jax.numpy as jnp
from jax.experimental import pallas as pl
from jax.experimental.pallas import tpu as pltpu


def _round_up(x, m):
    return (x + m - 1) // m * m


def _cdiv(a, b):
    return -(-a // b)


def _max_prob_kernel(x_ref, out_ref, max_scratch, *, cls_id, num_cls,
                     n_total, tile_n, tiles_per_part, n_tiles):
    """One (part, N-tile) step for all batches.

    x_ref:       (B, C, TN) VMEM tile of the raw YOLO output (native dtype)
    out_ref:     (1, B, 128) per-part max, broadcast along lanes
    max_scratch: (B, TN)     running elementwise max across this part's tiles
    """
    p = pl.program_id(0)
    n = pl.program_id(1)

    @pl.when(n == 0)
    def _():
        max_scratch[...] = jnp.full(max_scratch.shape, -jnp.inf,
                                    max_scratch.dtype)

    x = x_ref[...]                                   # (B, C, TN), native dtype
    B, C, TN = x.shape
    xf = x.astype(jnp.float32)                       # keep exp/recip in f32

    ch = jax.lax.broadcasted_iota(jnp.int32, (B, C, TN), dimension=1)
    neg_inf = jnp.float32(-jnp.inf)

    # Target-class logit and objectness logit via masked sublane reductions
    # (no sublane-unaligned single-channel slices).
    logit_cls = jnp.sum(jnp.where(ch == 3 + cls_id, xf, 0.0), axis=1)  # (B,TN)
    obj_logit = jnp.sum(jnp.where(ch == 4, xf, 0.0), axis=1)           # (B,TN)

    # softmax(output[:, 3:3+num_cls, :], dim=1)[:, cls_id, :]
    #   = 1 / sum_j exp(x_j - x_cls)   with non-class channels masked out.
    in_cls = jnp.logical_and(ch >= 3, ch < 3 + num_cls)
    shifted = jnp.where(in_cls, xf - logit_cls[:, None, :], neg_inf)
    denom = jnp.sum(jnp.exp(shifted), axis=1)                          # (B,TN)

    # TODO(synk): config.loss_target is a user-supplied callable; the standard
    # adversarial-patch config uses obj * cls, which is what is implemented:
    #   sigmoid(obj) * cls_prob = 1 / ((1 + exp(-obj)) * denom)
    confs_if_object = pl.reciprocal(
        (1.0 + jnp.exp(-obj_logit)) * denom, approx=True)              # (B,TN)

    # Mask lanes past the end of N (partial tail tile / clamped duplicate tile).
    tile_idx = jnp.minimum(p * tiles_per_part + n, n_tiles - 1)
    lane = jax.lax.broadcasted_iota(jnp.int32, (B, TN), dimension=1)
    valid = (tile_idx * tile_n + lane) < n_total
    confs_if_object = jnp.where(valid, confs_if_object, neg_inf)

    max_scratch[...] = jnp.maximum(max_scratch[...], confs_if_object)

    @pl.when(n == pl.num_programs(1) - 1)
    def _():
        out_ref[...] = jnp.broadcast_to(
            jnp.max(max_scratch[...], axis=-1, keepdims=True), out_ref.shape)


def yolov8_max_prob_extractor(yolo_output, *, cls_id, num_cls,
                              tile_n=4096, num_parts=2):
    """JAX/Pallas equivalent of yolov8_MaxProbExtractor.forward.

    yolo_output: tuple/list whose first element is an array of shape (B, C, N).
    returns:     (B,) float32 array of the per-batch max confidence.
    """
    x = yolo_output[0]
    B, C, N = x.shape
    assert C >= max(5, 3 + num_cls), "channel dim too small for obj/classes"
    assert 0 <= cls_id < num_cls

    itemsize = jnp.dtype(x.dtype).itemsize
    # Cap the tile so the double-buffered input block stays <= ~8 MiB (portable
    # to v5e's 16 MiB scoped-VMEM default), and never wider than (padded) N.
    max_tile = (8 * 1024 * 1024) // (2 * B * C * itemsize)
    max_tile = max(128, (max_tile // 128) * 128)
    tile_n = max(128, min(tile_n, max_tile, _round_up(N, 128)))
    tile_n = _round_up(tile_n, 128)

    n_tiles = _cdiv(N, tile_n)
    parts = max(1, min(num_parts, n_tiles))      # v7x: feed both TensorCores
    tiles_per_part = _cdiv(n_tiles, parts)

    kernel = functools.partial(
        _max_prob_kernel, cls_id=cls_id, num_cls=num_cls, n_total=N,
        tile_n=tile_n, tiles_per_part=tiles_per_part, n_tiles=n_tiles)

    def x_index_map(p, n):
        # Clamp so a part's trailing (duplicated) step re-reads the last real
        # tile instead of issuing an out-of-range block DMA.
        return (0, 0, jnp.minimum(p * tiles_per_part + n, n_tiles - 1))

    out = pl.pallas_call(
        kernel,
        out_shape=jax.ShapeDtypeStruct((parts, B, 128), jnp.float32),
        grid_spec=pltpu.PrefetchScalarGridSpec(
            num_scalar_prefetch=0,
            grid=(parts, tiles_per_part),
            in_specs=[pl.BlockSpec((B, C, tile_n), x_index_map)],
            out_specs=pl.BlockSpec((1, B, 128), lambda p, n: (p, 0, 0)),
            scratch_shapes=[pltpu.VMEM((B, tile_n), jnp.float32)],
        ),
        compiler_params=pltpu.CompilerParams(
            dimension_semantics=("parallel", "arbitrary"),
            vmem_limit_bytes=32 * 1024 * 1024,
        ),
    )(x)
    # Combine the per-part partial maxima.
    return jnp.max(out[:, :, 0], axis=0)


def _reference(x, cls_id, num_cls):
    """Plain-JAX reference mirroring the PyTorch forward exactly."""
    obj = jax.nn.sigmoid(x[:, 4, :])
    logits = x[:, 3:3 + num_cls, :]
    normal_confs = jax.nn.softmax(logits, axis=1)
    confs_for_class = normal_confs[:, cls_id, :]
    confs_if_object = obj * confs_for_class
    return jnp.max(confs_if_object, axis=1)


if __name__ == "__main__":
    key = jax.random.PRNGKey(0)
    cases = [
        # (B, num_cls, N,    cls_id, tile_n)
        (2, 8,       300,   0,      4096),   # single partial tile, tail masking
        (2, 8,       777,   1,      128),    # multi-tile, 2 parts, clamped dup tile
        (2, 80,      8400,  11,     4096),   # realistic YOLOv8 head (C=84, N=8400)
    ]
    for idx, (B, num_cls, N, cls_id, tile_n) in enumerate(cases):
        C = 4 + num_cls
        key, sub = jax.random.split(key)
        yolo_raw = jax.random.normal(sub, (B, C, N), dtype=jnp.float32)
        yolo_output = (yolo_raw,)                    # module indexes YOLOoutput[0]

        max_conf = yolov8_max_prob_extractor(
            yolo_output, cls_id=cls_id, num_cls=num_cls, tile_n=tile_n)
        max_conf = jax.block_until_ready(max_conf)

        expected = _reference(yolo_raw, cls_id, num_cls)
        assert max_conf.shape == (B,), (idx, max_conf.shape)
        # pl.reciprocal(approx=True) is ~bf16-level accurate -> loosened tolerance
        assert jnp.allclose(max_conf, expected, rtol=1e-2, atol=1e-3), (
            idx, max_conf, expected)

    print("KERNEL_OK")
</pallas_src>

<mosaic_0001>
module attributes {stable_mosaic.version = 11 : i64} {
  func.func @_max_prob_kernel(%arg0: i32, %arg1: i32, %arg2: memref<2x12x384xf32, #tpu.memory_space<vmem>>, %arg3: memref<1x2x128xf32, #tpu.memory_space<vmem>>, %arg4: memref<2x384xf32, #tpu.memory_space<vmem>>) attributes {dimension_semantics = [#tpu.dimension_semantics<parallel>, #tpu.dimension_semantics<arbitrary>], iteration_bounds = array<i64: 1, 1>, scalar_prefetch = 0 : i64, scratch_operands = 1 : i64, tpu.core_type = #tpu.core_type<tc>, window_params = [{transform_indices = @transform_0, window_bounds = array<i64: 2, 12, 384>}, {transform_indices = @transform_1, window_bounds = array<i64: 1, 2, 128>}]} {
    %c0_i32 = arith.constant 0 : i32
    %0 = arith.cmpi eq, %arg1, %c0_i32 : i32
    %1 = arith.extui %0 : i1 to i32
    %c0_i32_0 = arith.constant 0 : i32
    %2 = arith.cmpi ne, %1, %c0_i32_0 : i32
    scf.if %2 {
      %cst_19 = arith.constant 0xFF800000 : f32
      %51 = vector.broadcast %cst_19 : f32 to vector<2x384xf32>
      %c0_20 = arith.constant 0 : index
      %c0_21 = arith.constant 0 : index
      %52 = vector.load %arg4[%c0_20, %c0_21] : memref<2x384xf32, #tpu.memory_space<vmem>>, vector<2x384xf32>
      tpu.vector_store %arg4[%c0_20, %c0_21], %51 {strides = array<i32>} : memref<2x384xf32, #tpu.memory_space<vmem>>, vector<2x384xf32>,
    } else {
    }
    %c0 = arith.constant 0 : index
    %c0_1 = arith.constant 0 : index
    %c0_2 = arith.constant 0 : index
    %3 = vector.load %arg2[%c0, %c0_1, %c0_2] : memref<2x12x384xf32, #tpu.memory_space<vmem>>, vector<2x12x384xf32>
    %4 = tpu.iota {dimensions = array<i32: 1>} : vector<2x12x384xi32>
    %c3_i32 = arith.constant 3 : i32
    %5 = vector.broadcast %c3_i32 : i32 to vector<2x12x384xi32>
    %6 = arith.cmpi eq, %4, %5 : vector<2x12x384xi32>
    %cst = arith.constant 0.000000e+00 : f32
    %7 = vector.broadcast %cst : f32 to vector<2x12x384xf32>
    %8 = arith.select %6, %3, %7 : vector<2x12x384xi1>, vector<2x12x384xf32>
    %cst_3 = arith.constant dense<0.000000e+00> : vector<2x384xf32>
    %9 = vector.multi_reduction <add>, %8, %cst_3 [1] : vector<2x12x384xf32> to vector<2x384xf32>
    %c4_i32 = arith.constant 4 : i32
    %10 = vector.broadcast %c4_i32 : i32 to vector<2x12x384xi32>
    %11 = arith.cmpi eq, %4, %10 : vector<2x12x384xi32>
    %cst_4 = arith.constant 0.000000e+00 : f32
    %12 = vector.broadcast %cst_4 : f32 to vector<2x12x384xf32>
    %13 = arith.select %11, %3, %12 : vector<2x12x384xi1>, vector<2x12x384xf32>
    %cst_5 = arith.constant dense<0.000000e+00> : vector<2x384xf32>
    %14 = vector.multi_reduction <add>, %13, %cst_5 [1] : vector<2x12x384xf32> to vector<2x384xf32>
    %c3_i32_6 = arith.constant 3 : i32
    %15 = vector.broadcast %c3_i32_6 : i32 to vector<2x12x384xi32>
    %16 = arith.cmpi sge, %4, %15 : vector<2x12x384xi32>
    %c11_i32 = arith.constant 11 : i32
    %17 = vector.broadcast %c11_i32 : i32 to vector<2x12x384xi32>
    %18 = arith.cmpi slt, %4, %17 : vector<2x12x384xi32>
    %19 = arith.andi %16, %18 : vector<2x12x384xi1>
    %20 = vector.shape_cast %9 : vector<2x384xf32> to vector<2x1x384xf32>
    %21 = vector.broadcast %20 : vector<2x1x384xf32> to vector<2x12x384xf32>
    %22 = arith.subf %3, %21 : vector<2x12x384xf32>
    %cst_7 = arith.constant 0xFF800000 : f32
    %23 = vector.broadcast %cst_7 : f32 to vector<2x12x384xf32>
    %24 = arith.select %19, %22, %23 : vector<2x12x384xi1>, vector<2x12x384xf32>
    %25 = math.exp %24 : vector<2x12x384xf32>
    %cst_8 = arith.constant dense<0.000000e+00> : vector<2x384xf32>
    %26 = vector.multi_reduction <add>, %25, %cst_8 [1] : vector<2x12x384xf32> to vector<2x384xf32>
    %cst_9 = arith.constant 0.000000e+00 : f32
    %27 = vector.broadcast %cst_9 : f32 to vector<2x384xf32>
    %28 = arith.subf %27, %14 : vector<2x384xf32>
    %29 = math.exp %28 : vector<2x384xf32>
    %cst_10 = arith.constant 1.000000e+00 : f32
    %30 = vector.broadcast %cst_10 : f32 to vector<2x384xf32>
    %31 = arith.addf %30, %29 : vector<2x384xf32>
    %32 = arith.mulf %31, %26 : vector<2x384xf32>
    %33 = tpu.reciprocal %32 {approx = true} : vector<2x384xf32> -> vector<2x384xf32>
    %c1_i32 = arith.constant 1 : i32
    %34 = arith.muli %arg0, %c1_i32 : i32
    %35 = arith.addi %34, %arg1 : i32
    %c0_i32_11 = arith.constant 0 : i32
    %36 = arith.minsi %35, %c0_i32_11 : i32
    %37 = tpu.iota {dimensions = array<i32: 1>} : vector<2x384xi32>
    %c384_i32 = arith.constant 384 : i32
    %38 = arith.muli %36, %c384_i32 : i32
    %39 = vector.broadcast %38 : i32 to vector<2x384xi32>
    %40 = arith.addi %39, %37 : vector<2x384xi32>
    %c300_i32 = arith.constant 300 : i32
    %41 = vector.broadcast %c300_i32 : i32 to vector<2x384xi32>
    %42 = arith.cmpi slt, %40, %41 : vector<2x384xi32>
    %cst_12 = arith.constant 0xFF800000 : f32
    %43 = vector.broadcast %cst_12 : f32 to vector<2x384xf32>
    %44 = arith.select %42, %33, %43 : vector<2x384xi1>, vector<2x384xf32>
    %c0_13 = arith.constant 0 : index
    %c0_14 = arith.constant 0 : index
    %45 = vector.load %arg4[%c0_13, %c0_14] : memref<2x384xf32, #tpu.memory_space<vmem>>, vector<2x384xf32>
    %46 = arith.maximumf %45, %44 : vector<2x384xf32>
    %c0_15 = arith.constant 0 : index
    %c0_16 = arith.constant 0 : index
    %47 = vector.load %arg4[%c0_15, %c0_16] : memref<2x384xf32, #tpu.memory_space<vmem>>, vector<2x384xf32>
    tpu.vector_store %arg4[%c0_15, %c0_16], %46 {strides = array<i32>} : memref<2x384xf32, #tpu.memory_space<vmem>>, vector<2x384xf32>,
    %c0_i32_17 = arith.constant 0 : i32
    %48 = arith.cmpi eq, %arg1, %c0_i32_17 : i32
    %49 = arith.extui %48 : i1 to i32
    %c0_i32_18 = arith.constant 0 : i32
    %50 = arith.cmpi ne, %49, %c0_i32_18 : i32
    scf.if %50 {
      %c0_19 = arith.constant 0 : index
      %c0_20 = arith.constant 0 : index
      %51 = vector.load %arg4[%c0_19, %c0_20] : memref<2x384xf32, #tpu.memory_space<vmem>>, vector<2x384xf32>
      %cst_21 = arith.constant dense<0xFF800000> : vector<2xf32>
      %52 = vector.multi_reduction <maximumf>, %51, %cst_21 [1] : vector<2x384xf32> to vector<2xf32>
      %53 = vector.shape_cast %52 : vector<2xf32> to vector<2x1xf32>
      %54 = vector.shape_cast %53 : vector<2x1xf32> to vector<1x2x1xf32>
      %55 = vector.broadcast %54 : vector<1x2x1xf32> to vector<1x2x128xf32>
      %c0_22 = arith.constant 0 : index
      %c0_23 = arith.constant 0 : index
      %c0_24 = arith.constant 0 : index
      %56 = vector.load %arg3[%c0_22, %c0_23, %c0_24] : memref<1x2x128xf32, #tpu.memory_space<vmem>>, vector<1x2x128xf32>
      tpu.vector_store %arg3[%c0_22, %c0_23, %c0_24], %55 {strides = array<i32>} : memref<1x2x128xf32, #tpu.memory_space<vmem>>, vector<1x2x128xf32>,
    } else {
    }
    return
  }
  func.func @transform_0(%arg0: i32, %arg1: i32) -> (i32, i32, i32) {
    %c1_i32 = arith.constant 1 : i32
    %0 = arith.muli %arg0, %c1_i32 : i32
    %1 = arith.addi %0, %arg1 : i32
    %c0_i32 = arith.constant 0 : i32
    %2 = arith.minsi %1, %c0_i32 : i32
    %c0_i32_0 = arith.constant 0 : i32
    %c0_i32_1 = arith.constant 0 : i32
    %c0_i32_2 = arith.constant 0 : i32
    return %c0_i32_0, %c0_i32_1, %2 : i32, i32, i32
  }
  func.func @transform_1(%arg0: i32, %arg1: i32) -> (i32, i32, i32) {
    %c0_i32 = arith.constant 0 : i32
    %c0_i32_0 = arith.constant 0 : i32
    %c0_i32_1 = arith.constant 0 : i32
    return %arg0, %c0_i32, %c0_i32_0 : i32, i32, i32
  }
}

</mosaic_0001>

<llo_original>
// kernel: tpu_custom_call.1
$region0: #{tpu_custom_call.1}
  #allocation0 [shape = 'u32[]', space=smem, size = 0x4, offset = 0x4, fixed_abs, tag = 'smem constant byte address 0x4 - core index']
  #allocation1 [shape = 'u32[144,128]{1,0:T(1,128)}', space=vmem, size = 0x12000, scoped, tag = 'internal scratch']
  #allocation2 [shape = 'f32[2,384]{1,0:T(2,128)}', space=vmem, size = 0xc00, scoped, tag = 'scratch operand']
  %s0 = inlined_call_operand.vmem [shape: f32[2,12,300], index: 0, kind: input, shape index: {}]
  %s1 = inlined_call_operand.hbm [shape: f32[1,2,128], index: 1, kind: output, shape index: {}]
  %s2 = sld [smem:[#allocation0]]
  $region22: #{tpu_custom_call.1} parent=0
    _
  %s4 = ssub.s32 1, %s2
  %s5 = scalar_select 0, %s4, %s2
  $region1: #{tpu_custom_call.1} parent=0
    #allocation3 [shape = 'u8[1024]{0}', space=vmem, size = 0x400, scoped, tag = 'output window, operand 0, single buffered']
    #allocation4 [shape = 's32[1]{0}', space=sflag, size = 0x4, scoped, tag = 'scoped memory for tpu_custom_call.1']
    %6 = vsyncpa [#allocation4], 0
    // Predicated region
    $region2: #{tpu_custom_call.1} parent=1 // pred_check
      _
    $region3: #{tpu_custom_call.1} parent=1 // pred_check_branch
      %8 = sbr.rel (0) target = $region5
    $region4: #{tpu_custom_call.1} parent=1 // pred_region
      %s9 = sadd.s32 0, 0
      %p10 = scmp.lt.s32.totalorder %s9, 0
      %s11 = scalar_select %p10, %s9, 0
      %s12 = smul.u32 3, %s11
      %p13 = scmp.lt.s32.totalorder %s12, 2
      %s14 = scalar_select %p13, %s12, 2
      %s15 = smul.addr %s14, 8
      %s16 = scalar_lea.vmem %s0, %s15
      %s17 = sadd.s32 0, 0
      %p18 = scmp.lt.s32.totalorder %s17, 0
      %s19 = scalar_select %p18, %s17, 0
      %s20 = smul.u32 3, %s19
    $region5: #{tpu_custom_call.1} parent=1 // pred_fallthru
      _
    %s21 = sadd.s32 0, 0
    %p22 = scmp.lt.s32.totalorder %s21, 0
    %s23 = scalar_select %p22, %s21, 0
    %s24 = smul.u32 3, %s23
    %p25 = scmp.lt.s32.totalorder %s24, 2
    %s26 = scalar_select %p25, %s24, 2
    %s27 = smul.addr %s26, 8
    %s28 = scalar_lea.vmem %s0, %s27
    %s29 = sadd.s32 0, 0
    %p30 = scmp.lt.s32.totalorder %s29, 0
    %s31 = scalar_select %p30, %s29, 0
    %s32 = smul.u32 3, %s31
    %p33 = scmp.lt.s32.totalorder %s32, 2
    %s34 = scalar_select %p33, %s32, 2
    %s35 = smul.addr %s34, 8
    %s36 = scalar_lea.vmem %s0, %s35
    %s37 = sadd.s32 0, 0
    %p38 = scmp.lt.s32.totalorder %s37, 0
    %s39 = scalar_select %p38, %s37, 0
    %s40 = smul.u32 3, %s39
    %p41 = scmp.eq.s32.totalorder 0, 0
    // Predicated region
    $region6: #{tpu_custom_call.1} parent=1 // pred_check
      %p42 = pneg %p41
    $region7: #{tpu_custom_call.1} parent=1 // pred_check_branch
      %44 = sbr.rel (%p42) target = $region9
    $region8: #{tpu_custom_call.1} parent=1 // pred_region
      %45 = vst [vmem:[#allocation2] sm:$0x3f] -inf
    $region9: #{tpu_custom_call.1} parent=1 // pred_fallthru
      _
    %v46 = vld [vmem:[%s36] sm:$0xff]
    %v47 = vld [vmem:[%s36 + $0x8] sm:$0xff]
    %v48 = vld [vmem:[%s36 + $0x10] sm:$0xff]
    %v49 = vld [vmem:[%s36 + $0x18] sm:$0xf]
    %v50 = vld [vmem:[%s36 + $0x20] sm:$0xf]
    %v51 = vld [vmem:[%s36 + $0x28] sm:$0xf]
    %v52 = vld [vmem:[%s36 + $0x30] sm:$0xff]
    %v53 = vld [vmem:[%s36 + $0x38] sm:$0xff]
    %v54 = vld [vmem:[%s36 + $0x40] sm:$0xff]
    %v55 = vld [vmem:[%s36 + $0x48] sm:$0xf]
    %v56 = vld [vmem:[%s36 + $0x50] sm:$0xf]
    %v57 = vld [vmem:[%s36 + $0x58] sm:$0xf]
    %v58 = vlaneseq
    %v59 = vshrl.u32 %v58, 7
    %v60 = vadd.s32 %v59, 8
    %vm61 = vcmp.eq.s32.totalorder %v59, 3
    %vm62 = vcmp.eq.s32.totalorder %v60, 3
    %v63 = vsel %vm61, %v46, 0.0
    %v64 = vsel %vm61, %v47, 0.0
    %v65 = vsel %vm61, %v48, 0.0
    %v66 = vsel %vm62, %v49, 0.0
    %v67 = vsel %vm62, %v50, 0.0
    %v68 = vsel %vm62, %v51, 0.0
    %v69 = vsel %vm61, %v52, 0.0
    %v70 = vsel %vm61, %v53, 0.0
    %v71 = vsel %vm61, %v54, 0.0
    %v72 = vsel %vm62, %v55, 0.0
    %v73 = vsel %vm62, %v56, 0.0
    %v74 = vsel %vm62, %v57, 0.0
    %vm75 = vcmask 1043456
    %v76 = vsel %vm75, %v66, 0.0
    %v77 = vadd.f32 %v63, %v76
    %v78 = vrot.slane %v77, 4
    %v79 = vadd.f32 %v77, %v78
    %v80 = vrot.slane %v79, 2
    %v81 = vadd.f32 %v79, %v80
    %v82 = vrot.slane %v81, 1
    %v83 = vadd.f32 %v81, %v82
    %v84 = vsel %vm75, %v67, 0.0
    %v85 = vadd.f32 %v64, %v84
    %v86 = vrot.slane %v85, 4
    %v87 = vadd.f32 %v85, %v86
    %v88 = vrot.slane %v87, 2
    %v89 = vadd.f32 %v87, %v88
    %v90 = vrot.slane %v89, 1
    %v91 = vadd.f32 %v89, %v90
    %v92 = vsel %vm75, %v68, 0.0
    %v93 = vadd.f32 %v65, %v92
    %v94 = vrot.slane %v93, 4
    %v95 = vadd.f32 %v93, %v94
    %v96 = vrot.slane %v95, 2
    %v97 = vadd.f32 %v95, %v96
    %v98 = vrot.slane %v97, 1
    %v99 = vadd.f32 %v97, %v98
    %v100 = vsel %vm75, %v72, 0.0
    %v101 = vadd.f32 %v69, %v100
    %v102 = vrot.slane %v101, 4
    %v103 = vadd.f32 %v101, %v102
    %v104 = vrot.slane %v103, 2
    %v105 = vadd.f32 %v103, %v104
    %v106 = vrot.slane %v105, 1
    %v107 = vadd.f32 %v105, %v106
    %v108 = vsel %vm75, %v73, 0.0
    %v109 = vadd.f32 %v70, %v108
    %v110 = vrot.slane %v109, 4
    %v111 = vadd.f32 %v109, %v110
    %v112 = vrot.slane %v111, 2
    %v113 = vadd.f32 %v111, %v112
    %v114 = vrot.slane %v113, 1
    %v115 = vadd.f32 %v113, %v114
    %v116 = vsel %vm75, %v74, 0.0
    %v117 = vadd.f32 %v71, %v116
    %v118 = vrot.slane %v117, 4
    %v119 = vadd.f32 %v117, %v118
    %v120 = vrot.slane %v119, 2
    %v121 = vadd.f32 %v119, %v120
    %v122 = vrot.slane %v121, 1
    %v123 = vadd.f32 %v121, %v122
    %vm124 = vcmp.eq.s32.totalorder %v59, 4
    %vm125 = vcmp.eq.s32.totalorder %v60, 4
    %v126 = vsel %vm124, %v46, 0.0
    %v127 = vsel %vm124, %v47, 0.0
    %v128 = vsel %vm124, %v48, 0.0
    %v129 = vsel %vm125, %v49, 0.0
    %v130 = vsel %vm125, %v50, 0.0
    %v131 = vsel %vm125, %v51, 0.0
    %v132 = vsel %vm124, %v52, 0.0
    %v133 = vsel %vm124, %v53, 0.0
    %v134 = vsel %vm124, %v54, 0.0
    %v135 = vsel %vm125, %v55, 0.0
    %v136 = vsel %vm125, %v56, 0.0
    %v137 = vsel %vm125, %v57, 0.0
    %v138 = vsel %vm75, %v129, 0.0
    %v139 = vadd.f32 %v126, %v138
    %v140 = vrot.slane %v139, 4
    %v141 = vadd.f32 %v139, %v140
    %v142 = vrot.slane %v141, 2
    %v143 = vadd.f32 %v141, %v142
    %v144 = vrot.slane %v143, 1
    %v145 = vadd.f32 %v143, %v144
    %v146 = vsel %vm75, %v130, 0.0
    %v147 = vadd.f32 %v127, %v146
    %v148 = vrot.slane %v147, 4
    %v149 = vadd.f32 %v147, %v148
    %v150 = vrot.slane %v149, 2
    %v151 = vadd.f32 %v149, %v150
    %v152 = vrot.slane %v151, 1
    %v153 = vadd.f32 %v151, %v152
    %v154 = vsel %vm75, %v131, 0.0
    %v155 = vadd.f32 %v128, %v154
    %v156 = vrot.slane %v155, 4
    %v157 = vadd.f32 %v155, %v156
    %v158 = vrot.slane %v157, 2
    %v159 = vadd.f32 %v157, %v158
    %v160 = vrot.slane %v159, 1
    %v161 = vadd.f32 %v159, %v160
    %v162 = vsel %vm75, %v135, 0.0
    %v163 = vadd.f32 %v132, %v162
    %v164 = vrot.slane %v163, 4
    %v165 = vadd.f32 %v163, %v164
    %v166 = vrot.slane %v165, 2
    %v167 = vadd.f32 %v165, %v166
    %v168 = vrot.slane %v167, 1
    %v169 = vadd.f32 %v167, %v168
    %v170 = vsel %vm75, %v136, 0.0
    %v171 = vadd.f32 %v133, %v170
    %v172 = vrot.slane %v171, 4
    %v173 = vadd.f32 %v171, %v172
    %v174 = vrot.slane %v173, 2
    %v175 = vadd.f32 %v173, %v174
    %v176 = vrot.slane %v175, 1
    %v177 = vadd.f32 %v175, %v176
    %v178 = vsel %vm75, %v137, 0.0
    %v179 = vadd.f32 %v134, %v178
    %v180 = vrot.slane %v179, 4
    %v181 = vadd.f32 %v179, %v180
    %v182 = vrot.slane %v181, 2
    %v183 = vadd.f32 %v181, %v182
    %v184 = vrot.slane %v183, 1
    %v185 = vadd.f32 %v183, %v184
    %vm186 = vcmp.ge.s32.totalorder %v59, 3
    %vm187 = vcmp.ge.s32.totalorder %v60, 3
    %vm188 = vcmp.lt.s32.totalorder %v59, 11
    %vm189 = vcmp.lt.s32.totalorder %v60, 11
    %vm190 = vmand %vm186, %vm188
    %vm191 = vmand %vm187, %vm189
    %v192 = vsub.f32 %v46, %v83
    %v193 = vsub.f32 %v47, %v91
    %v194 = vsub.f32 %v48, %v99
    %v195 = vsub.f32 %v49, %v83
    %v196 = vsub.f32 %v50, %v91
    %v197 = vsub.f32 %v51, %v99
    %v198 = vsub.f32 %v52, %v107
    %v199 = vsub.f32 %v53, %v115
    %v200 = vsub.f32 %v54, %v123
    %v201 = vsub.f32 %v55, %v107
    %v202 = vsub.f32 %v56, %v115
    %v203 = vsub.f32 %v57, %v123
    %v204 = vsel %vm190, %v192, -inf
    %v205 = vsel %vm190, %v193, -inf
    %v206 = vsel %vm190, %v194, -inf
    %v207 = vsel %vm191, %v195, -inf
    %v208 = vsel %vm191, %v196, -inf
    %v209 = vsel %vm191, %v197, -inf
    %v210 = vsel %vm190, %v198, -inf
    %v211 = vsel %vm190, %v199, -inf
    %v212 = vsel %vm190, %v200, -inf
    %v213 = vsel %vm191, %v201, -inf
    %v214 = vsel %vm191, %v202, -inf
    %v215 = vsel %vm191, %v203, -inf
    %v216 = vmul.f32 %v204, 1.442695
    %v217 = vpow.pop %v216
    %v218 = vmul.f32 %v205, 1.442695
    %v219 = vpow.pop %v218
    %v220 = vmul.f32 %v206, 1.442695
    %v221 = vpow.pop %v220
    %v222 = vmul.f32 %v207, 1.442695
    %v223 = vpow.pop %v222
    %v224 = vmul.f32 %v208, 1.442695
    %v225 = vpow.pop %v224
    %v226 = vmul.f32 %v209, 1.442695
    %v227 = vpow.pop %v226
    %v228 = vmul.f32 %v210, 1.442695
    %v229 = vpow.pop %v228
    %v230 = vmul.f32 %v211, 1.442695
    %v231 = vpow.pop %v230
    %v232 = vmul.f32 %v212, 1.442695
    %v233 = vpow.pop %v232
    %v234 = vmul.f32 %v213, 1.442695
    %v235 = vpow.pop %v234
    %v236 = vmul.f32 %v214, 1.442695
    %v237 = vpow.pop %v236
    %v238 = vmul.f32 %v215, 1.442695
    %v239 = vpow.pop %v238
    %v240 = vsel %vm75, %v223, 0.0
    %v241 = vadd.f32 %v217, %v240
    %v242 = vrot.slane %v241, 4
    %v243 = vadd.f32 %v241, %v242
    %v244 = vrot.slane %v243, 2
    %v245 = vadd.f32 %v243, %v244
    %v246 = vrot.slane %v245, 1
    %v247 = vadd.f32 %v245, %v246
    %v248 = vsel %vm75, %v225, 0.0
    %v249 = vadd.f32 %v219, %v248
    %v250 = vrot.slane %v249, 4
    %v251 = vadd.f32 %v249, %v250
    %v252 = vrot.slane %v251, 2
    %v253 = vadd.f32 %v251, %v252
    %v254 = vrot.slane %v253, 1
    %v255 = vadd.f32 %v253, %v254
    %v256 = vsel %vm75, %v227, 0.0
    %v257 = vadd.f32 %v221, %v256
    %v258 = vrot.slane %v257, 4
    %v259 = vadd.f32 %v257, %v258
    %v260 = vrot.slane %v259, 2
    %v261 = vadd.f32 %v259, %v260
    %v262 = vrot.slane %v261, 1
    %v263 = vadd.f32 %v261, %v262
    %v264 = vsel %vm75, %v235, 0.0
    %v265 = vadd.f32 %v229, %v264
    %v266 = vrot.slane %v265, 4
    %v267 = vadd.f32 %v265, %v266
    %v268 = vrot.slane %v267, 2
    %v269 = vadd.f32 %v267, %v268
    %v270 = vrot.slane %v269, 1
    %v271 = vadd.f32 %v269, %v270
    %v272 = vsel %vm75, %v237, 0.0
    %v273 = vadd.f32 %v231, %v272
    %v274 = vrot.slane %v273, 4
    %v275 = vadd.f32 %v273, %v274
    %v276 = vrot.slane %v275, 2
    %v277 = vadd.f32 %v275, %v276
    %v278 = vrot.slane %v277, 1
    %v279 = vadd.f32 %v277, %v278
    %v280 = vsel %vm75, %v239, 0.0
    %v281 = vadd.f32 %v233, %v280
    %v282 = vrot.slane %v281, 4
    %v283 = vadd.f32 %v281, %v282
    %v284 = vrot.slane %v283, 2
    %v285 = vadd.f32 %v283, %v284
    %v286 = vrot.slane %v285, 1
    %v287 = vadd.f32 %v285, %v286
    %v288 = vsub.f32 0.0, %v145
    %v289 = vsub.f32 0.0, %v153
    %v290 = vsub.f32 0.0, %v161
    %v291 = vsub.f32 0.0, %v169
    %v292 = vsub.f32 0.0, %v177
    %v293 = vsub.f32 0.0, %v185
    %v294 = vmul.f32 %v288, 1.442695
    %v295 = vpow.pop %v294
    %v296 = vmul.f32 %v289, 1.442695
    %v297 = vpow.pop %v296
    %v298 = vmul.f32 %v290, 1.442695
    %v299 = vpow.pop %v298
    %v300 = vmul.f32 %v291, 1.442695
    %v301 = vpow.pop %v300
    %v302 = vmul.f32 %v292, 1.442695
    %v303 = vpow.pop %v302
    %v304 = vmul.f32 %v293, 1.442695
    %v305 = vpow.pop %v304
    %v306 = vadd.f32 %v295, 1.0
    %v307 = vadd.f32 %v297, 1.0
    %v308 = vadd.f32 %v299, 1.0
    %v309 = vadd.f32 %v301, 1.0
    %v310 = vadd.f32 %v303, 1.0
    %v311 = vadd.f32 %v305, 1.0
    %v312 = vmul.f32 %v306, %v247
    %v313 = vmul.f32 %v307, %v255
    %v314 = vmul.f32 %v308, %v263
    %v315 = vmul.f32 %v309, %v271
    %v316 = vmul.f32 %v310, %v279
    %v317 = vmul.f32 %v311, %v287
    %v318 = vrcp.pop %v312
    %v319 = vrcp.pop %v313
    %v320 = vrcp.pop %v314
    %v321 = vrcp.pop %v315
    %v322 = vrcp.pop %v316
    %v323 = vrcp.pop %v317
    %s324 = sadd.s32 0, 0
    %p325 = scmp.lt.s32.totalorder %s324, 0
    %s326 = scalar_select %p325, %s324, 0
    %v327 = vlaneseq
    %v328 = vand.u32 %v327, 127
    %v329 = vadd.s32 %v328, 128
    %v330 = vadd.s32 %v328, 256
    %s331 = smul.u32 %s326, 384
    %v332 = vstv %s331
    %v333 = vadd.s32 %v332, %v328
    %v334 = vadd.s32 %v332, %v329
    %v335 = vadd.s32 %v332, %v330
    %vm336 = vcmp.lt.s32.totalorder %v333, 300
    %vm337 = vcmp.lt.s32.totalorder %v334, 300
    %vm338 = vcmp.lt.s32.totalorder %v335, 300
    %vm345 = vcmask 1041409
    %v346 = vsel %vm345, %v321, %v318
    %v347 = vsel %vm345, %v322, %v319
    %v348 = vsel %vm345, %v323, %v320
    %v352 = vsel %vm336, %v346, -inf
    %v353 = vsel %vm337, %v347, -inf
    %v354 = vsel %vm338, %v348, -inf
    %v355 = vld [vmem:[#allocation2] sm:$0x3f]
    %v359 = vcombine.low %v352, %v353
    %v361 = vunpack.c.l.s4 1983009808
    %v362 = vunpack.c.0.s8 %v361
    %v363 = vlaneseq
    %v364 = vshrl.u32 %v363, 7
    %v365 = vsub.s32 %v362, %v364
    %v366 = vrot.slane %v359, %v365
    %v368 = vunpack.c.l.s4 1983009808
    %v369 = vunpack.c.0.s8 %v368
    %v370 = vlaneseq
    %v371 = vshrl.u32 %v370, 7
    %v372 = vsub.s32 %v369, %v371
    %v373 = vrot.slane %v354, %v372
    %v374 = vcombine.low %v366, %v373
    %v376 = vmax.f32 %v355, %v374
    %377 = vst [vmem:[#allocation2] sm:$0x3f] %v376
    // Predicated region
    $region10: #{tpu_custom_call.1} parent=1 // pred_check
      %p378 = pneg %p41
    $region11: #{tpu_custom_call.1} parent=1 // pred_check_branch
      %380 = sbr.rel (%p378) target = $region13
    $region12: #{tpu_custom_call.1} parent=1 // pred_region
      %v381 = vld [vmem:[#allocation2] sm:$0x3f]
      %v383 = vcombine.high %v381, %v381
      %v385 = vunpack.c.l.s4 1983009808
      %v386 = vunpack.c.0.s8 %v385
      %v387 = vlaneseq
      %v388 = vshrl.u32 %v387, 7
      %v389 = vsub.s32 %v386, %v388
      %v390 = vrot.slane %v381, %v389
      %v392 = vunpack.c.l.s4 1983009808
      %v393 = vunpack.c.0.s8 %v392
      %v394 = vlaneseq
      %v395 = vshrl.u32 %v394, 7
      %v396 = vsub.s32 %v393, %v395
      %v397 = vrot.slane %v383, %v396
      %v398 = vcombine.high %v390, %v390
      %vm402 = vcmask 1041408
      %v403 = vsel %vm402, %v390, -inf
      %v404 = vsel %vm402, %v398, -inf
      %v405 = vsel %vm402, %v397, -inf
      %v406 = vmax.f32 %v403, %v404
      %v407 = vmax.f32 %v406, %v405
      %408 = vmax.xlane.f32.xlu0 %v407
      %v409 = vpop.xlane.xlu0 %408
      %410 = vst [vmem:[#allocation3] sm:$0x3] %v409
    $region13: #{tpu_custom_call.1} parent=1 // pred_fallthru
      _
    // Predicated region
    $region14: #{tpu_custom_call.1} parent=1 // pred_check
      _
    $region15: #{tpu_custom_call.1} parent=1 // pred_check_branch
      %412 = sbr.rel (0) target = $region17
    $region16: #{tpu_custom_call.1} parent=1 // pred_region
      %s414 = ssub.s32 32, 32
      %415 = vsyncadd [#allocation4], %s414
      %s417 = sshll.u32 [#allocation3], 4
      %s418 = int_to_ptr.vmem [resolvable:$true] %s417
      %420 = dma.vmem_to_hbm [thread:$0]  %s418, 32, %s1, [#allocation4]
    $region17: #{tpu_custom_call.1} parent=1 // pred_fallthru
      _
    // Predicated region
    $region18: #{tpu_custom_call.1} parent=1 // pred_check
      _
    $region19: #{tpu_custom_call.1} parent=1 // pred_check_branch
      %422 = sbr.rel (0) target = $region21
    $region20: #{tpu_custom_call.1} parent=1 // pred_region
      %423 = dma.done [#allocation4], 32
    $region21: #{tpu_custom_call.1} parent=1 // pred_fallthru
      _
    %424 = vsyncpa [#allocation4], 1

</llo_original>
